<compile_context>
chip_gen: v6e
topology: v6e:2x2x1
jax: 0.10.0
libtpu: 0.0.40
codegen_flags: <defaults>
</compile_context>

<pallas_src>
import functools

import jax
import jax.numpy as jnp
from jax import lax
from jax.experimental import pallas as pl
from jax.experimental.pallas import tpu as pltpu


def _round_up(x, m):
    return ((x + m - 1) // m) * m


# ----------------------------------------------------------------------------
# Pallas kernel: sum of per-element focal loss over a lane-dense [rows, lane]
# view of the flat logits/targets.
# ----------------------------------------------------------------------------
def _focal_sum_kernel(x_ref, t_ref, out_ref, acc_ref, *, gamma, hard_targets,
                      rows_valid, block_rows, lane, needs_mask):
    p = pl.program_id(0)                 # parallel half (2-TensorCore split)
    s = pl.program_id(1)                 # reduction step within the half
    n_steps = pl.num_programs(1)

    @pl.when(s == 0)
    def _():
        acc_ref[...] = jnp.zeros_like(acc_ref)

    x = x_ref[...].astype(jnp.float32)   # logits,  (block_rows, lane)
    t = t_ref[...].astype(jnp.float32)   # targets, (block_rows, lane)

    # z = -x * (2t - 1); focal modulation = sigmoid(z)**gamma and the stable
    # BCE-with-logits term = max(x,0) - x*t + log(1 + exp(-|x|)).
    z = x * (1.0 - 2.0 * t)

    if hard_targets:
        # For t in {0,1}: |z| == |x|, so one exp serves both the BCE log term
        # and sigmoid(z); also max(x,0) - x*t == max(z,0) -> bce == softplus(z).
        e_z = jnp.exp(-jnp.abs(x))
        # 1+e is in (1, 2], so plain log is as accurate as log1p here (and a
        # guaranteed-supported Mosaic lowering).
        log1p_ez = jnp.log(1.0 + e_z)
        bce = jnp.maximum(z, 0.0) + log1p_ez
    else:
        e_bce = jnp.exp(-jnp.abs(x))
        bce = jnp.maximum(x, 0.0) - x * t + jnp.log(1.0 + e_bce)
        e_z = jnp.exp(-jnp.abs(z))
        log1p_ez = None

    if float(gamma) == 2.0:
        # Stable sigmoid(z) with an approximate EUP reciprocal (stays off the
        # VALU slots); sig*sig == exp(2 * logsigmoid(z)).
        sig = jnp.where(z >= 0.0, 1.0, e_z) * pl.reciprocal(1.0 + e_z,
                                                            approx=True)
        mod = sig * sig
    else:
        l1p = log1p_ez if log1p_ez is not None else jnp.log(1.0 + e_z)
        mod = jnp.exp(float(gamma) * (jnp.minimum(z, 0.0) - l1p))

    loss = mod * bce                     # (block_rows, lane)

    def _accumulate(l):
        if block_rows % 8 == 0:
            # Aligned in-register reduction to an (8, lane) partial: pure VPU
            # vadds; keeps the VMEM accumulator at 16 KiB.
            part = l.reshape(block_rows // 8, 8, lane).sum(axis=0)
        else:
            part = l                     # tiny single-block case
        acc_ref[...] += part

    if needs_mask:
        # Only the ragged boundary block (and a possible duplicate block when
        # the 2-way split over-covers) pays for masking; row indices stay well
        # inside int32 range.
        row0 = (p * n_steps + s) * block_rows
        in_bounds = row0 + block_rows <= rows_valid

        @pl.when(in_bounds)
        def _():
            _accumulate(loss)

        @pl.when(jnp.logical_not(in_bounds))
        def _():
            sub = lax.broadcasted_iota(jnp.int32, (block_rows, 1), 0)
            _accumulate(jnp.where(row0 + sub < rows_valid, loss, 0.0))
    else:
        _accumulate(loss)

    @pl.when(s == n_steps - 1)
    def _():
        total = jnp.sum(acc_ref[...])    # one cross-lane reduce per half
        i0 = lax.broadcasted_iota(jnp.int32, (8, 128), 0)
        i1 = lax.broadcasted_iota(jnp.int32, (8, 128), 1)
        out_ref[...] = jnp.where((i0 == 0) & (i1 == 0), total, 0.0)


_LANE = 512              # lane-dense slab width (4 x 128): unmasked vld/vst
_MAX_BLOCK_ROWS = 2048   # (2048, 512) f32 = 4 MiB per input per grid step
_MIN_SPLIT_ROWS = 1024   # only engage the 2-way core split above this


def _focal_sum(x_flat, t_flat, *, gamma, hard_targets,
               lane=_LANE, max_block_rows=_MAX_BLOCK_ROWS):
    """Sum of the per-element focal loss over flat logits/targets."""
    assert lane % 128 == 0 and max_block_rows % 8 == 0
    n = int(x_flat.shape[0])
    if n == 0:
        return jnp.zeros((), jnp.float32)

    # Pad only when the flat length is not lane-aligned (real NCHW inputs are
    # lane-aligned and take the zero-copy reshape path).  Padding uses a large
    # *finite* negative logit and target 0 so padded elements contribute
    # exactly 0 loss -> no per-element tail mask in the kernel.
    if n % lane != 0:
        pad = lane - n % lane
        x_flat = jnp.pad(x_flat, (0, pad), constant_values=-1e4)
        t_flat = jnp.pad(t_flat, (0, pad), constant_values=0)
    rows = x_flat.shape[0] // lane

    if rows < _MIN_SPLIT_ROWS:
        # Small input: a single block (a block equal to the full row extent is
        # always a legal block shape), one TensorCore.
        num_parallel, steps, block_rows = 1, 1, rows
    else:
        # Two balanced halves for 2-TC chips (v7x / megacore); on 1-TC chips
        # the leading axis is a serial loop and costs at most one masked
        # duplicate block (no padded HBM traffic).
        num_parallel = 2
        steps = pl.cdiv(rows, 2 * max_block_rows)
        block_rows = _round_up(pl.cdiv(rows, 2 * steps), 8)  # <= max_block_rows

    total_blocks = pl.cdiv(rows, block_rows)
    covered_rows = num_parallel * steps * block_rows
    needs_mask = covered_rows > rows          # ragged / duplicate boundary only
    acc_rows = 8 if block_rows % 8 == 0 else block_rows

    x2 = x_flat.reshape(rows, lane)           # free: whole-buffer, lane-dense
    t2 = t_flat.reshape(rows, lane)

    def in_map(p, s):
        # Clamp so an over-covering trailing block never indexes out of range;
        # the kernel masks the duplicate's contribution to zero.
        return (jnp.minimum(p * steps + s, total_blocks - 1), 0)

    kernel = functools.partial(
        _focal_sum_kernel, gamma=float(gamma), hard_targets=hard_targets,
        rows_valid=rows, block_rows=block_rows, lane=lane,
        needs_mask=needs_mask)

    out = pl.pallas_call(
        kernel,
        out_shape=jax.ShapeDtypeStruct((num_parallel * 8, 128), jnp.float32),
        grid_spec=pltpu.PrefetchScalarGridSpec(
            num_scalar_prefetch=0,
            grid=(num_parallel, steps),
            in_specs=[
                pl.BlockSpec((block_rows, lane), in_map),
                pl.BlockSpec((block_rows, lane), in_map),
            ],
            out_specs=pl.BlockSpec((8, 128), lambda p, s: (p, 0)),
            scratch_shapes=[pltpu.VMEM((acc_rows, lane), jnp.float32)],
        ),
        compiler_params=pltpu.CompilerParams(
            dimension_semantics=("parallel", "arbitrary"),
            vmem_limit_bytes=32 * 1024 * 1024,
        ),
    )(x2, t2)
    return jnp.sum(out)   # only the [p*8, 0] entries are nonzero


# ----------------------------------------------------------------------------
# FocalLoss.forward
# ----------------------------------------------------------------------------
def focal_loss(logit, target, gamma=2.0, sample_weight=None, hard_targets=True):
    """Forward pass of severstal FocalLoss.

    hard_targets=True assumes target values are exactly 0 or 1 (the
    segmentation-mask use case) and lets the kernel reuse one exp for both the
    BCE log term and the focal modulation.  Pass hard_targets=False for soft
    labels (general formulation).
    """
    if sample_weight is not None:
        # TODO(synk): per-row sample_weight needs per-row sums (not just the
        #             global sum); not implemented in the Pallas path.
        raise NotImplementedError("sample_weight is not supported")

    total = _focal_sum(logit.reshape(-1), target.reshape(-1),
                       gamma=gamma, hard_targets=hard_targets)

    if logit.ndim == 2:
        # loss.sum(dim=1).mean()  ==  total / batch
        return total / jnp.float32(logit.shape[0])
    # loss.mean() over all elements
    return total / jnp.float32(logit.size)


# Pure-JAX transcription of the PyTorch forward, for verification only.
def _focal_elementwise_reference(logit, target, gamma=2.0):
    logit = logit.astype(jnp.float32)
    target = target.astype(jnp.float32)
    max_val = jnp.maximum(-logit, 0.0)
    loss = (logit - logit * target + max_val
            + jnp.log(jnp.exp(-max_val) + jnp.exp(-logit - max_val)))
    invprobs = jax.nn.log_sigmoid(-logit * (target * 2.0 - 1.0))
    return jnp.exp(invprobs * gamma) * loss


def _focal_loss_reference(logit, target, gamma=2.0):
    loss = _focal_elementwise_reference(logit, target, gamma)
    if loss.ndim == 2:
        loss = loss.sum(axis=1)
    return loss.mean()


if __name__ == "__main__":
    key = jax.random.PRNGKey(0)
    keys = jax.random.split(key, 10)

    def check(got, want, rtol=5e-3, atol=1e-6, msg=""):
        # Tolerance covers the approximate EUP reciprocal + blocked summation.
        assert jnp.allclose(got, want, rtol=rtol, atol=atol), (msg, got, want)

    # 1) 4-D NCHW segmentation logits, binary targets (hard path, gamma=2).
    B, C, H, W = 2, 4, 16, 16
    logit = jax.random.normal(keys[0], (B, C, H, W), dtype=jnp.float32)
    target = (jax.random.uniform(keys[1], (B, C, H, W)) > 0.7).astype(jnp.float32)
    out = focal_loss(logit, target)
    jax.block_until_ready(out)
    check(out, _focal_loss_reference(logit, target), msg="4d hard gamma=2")

    # 2) 2-D case exercises the sum(dim=1).mean() branch.
    logit2 = jax.random.normal(keys[2], (8, 256), dtype=jnp.float32)
    target2 = (jax.random.uniform(keys[3], (8, 256)) > 0.5).astype(jnp.float32)
    check(focal_loss(logit2, target2), _focal_loss_reference(logit2, target2),
          msg="2d")

    # 3) Soft labels (general path) and a non-default gamma (general-gamma path).
    soft_t = jax.random.uniform(keys[4], (B, C, H, W), dtype=jnp.float32)
    check(focal_loss(logit, soft_t, hard_targets=False),
          _focal_loss_reference(logit, soft_t), msg="soft targets")
    check(focal_loss(logit, target, gamma=1.5),
          _focal_loss_reference(logit, target, gamma=1.5), msg="gamma=1.5")

    # 4) Non-lane-aligned size (negative-logit pad path) + 3-D rank.
    logit3 = jax.random.normal(keys[5], (5, 7, 11), dtype=jnp.float32)
    target3 = (jax.random.uniform(keys[6], (5, 7, 11)) > 0.5).astype(jnp.float32)
    check(focal_loss(logit3, target3), _focal_loss_reference(logit3, target3),
          msg="padded tail")

    # 5) bf16 inputs go straight into the kernel (no wrapper upcast).
    logit_bf = jax.random.normal(keys[7], (2, 4, 32, 32), dtype=jnp.bfloat16)
    target_bf = (jax.random.uniform(keys[8], (2, 4, 32, 32)) > 0.6).astype(jnp.bfloat16)
    check(focal_loss(logit_bf, target_bf),
          _focal_loss_reference(logit_bf, target_bf), msg="bf16 inputs")

    # 6) Exercise the multi-block / 2-way-parallel / ragged-boundary /
    #    clamped-duplicate code paths at a small size via tiny tile params.
    logit4 = jax.random.normal(keys[9], (2, 4, 131, 131), dtype=jnp.float32)
    target4 = (jax.random.uniform(keys[0], (2, 4, 131, 131)) > 0.5).astype(jnp.float32)
    got = _focal_sum(logit4.reshape(-1), target4.reshape(-1), gamma=2.0,
                     hard_targets=True, lane=128, max_block_rows=8)
    want = jnp.sum(_focal_elementwise_reference(logit4, target4))
    check(got, want, msg="tiled/masked path")

    # 7) Default tile parameters with the 2-way parallel split engaged.
    logit5 = jax.random.normal(keys[1], (2, 4, 256, 260), dtype=jnp.float32)
    target5 = (jax.random.uniform(keys[2], (2, 4, 256, 260)) > 0.5).astype(jnp.float32)
    check(focal_loss(logit5, target5), _focal_loss_reference(logit5, target5),
          msg="parallel split")

    print("KERNEL_OK")
</pallas_src>

<mosaic_0001>
module attributes {stable_mosaic.version = 11 : i64} {
  func.func @_focal_sum_kernel(%arg0: i32, %arg1: i32, %arg2: memref<4x512xf32, #tpu.memory_space<vmem>>, %arg3: memref<4x512xf32, #tpu.memory_space<vmem>>, %arg4: memref<8x128xf32, #tpu.memory_space<vmem>>, %arg5: memref<4x512xf32, #tpu.memory_space<vmem>>) attributes {dimension_semantics = [#tpu.dimension_semantics<parallel>, #tpu.dimension_semantics<arbitrary>], iteration_bounds = array<i64: 1, 1>, scalar_prefetch = 0 : i64, scratch_operands = 1 : i64, tpu.core_type = #tpu.core_type<tc>, window_params = [{transform_indices = @transform_0, window_bounds = array<i64: 4, 512>}, {transform_indices = @transform_1, window_bounds = array<i64: 4, 512>}, {transform_indices = @transform_2, window_bounds = array<i64: 8, 128>}]} {
    %c0_i32 = arith.constant 0 : i32
    %0 = arith.cmpi eq, %arg1, %c0_i32 : i32
    %1 = arith.extui %0 : i1 to i32
    %c0_i32_0 = arith.constant 0 : i32
    %2 = arith.cmpi ne, %1, %c0_i32_0 : i32
    scf.if %2 {
      %cst_17 = arith.constant 0.000000e+00 : f32
      %36 = vector.broadcast %cst_17 : f32 to vector<4x512xf32>
      %c0_18 = arith.constant 0 : index
      %c0_19 = arith.constant 0 : index
      %37 = vector.load %arg5[%c0_18, %c0_19] : memref<4x512xf32, #tpu.memory_space<vmem>>, vector<4x512xf32>
      tpu.vector_store %arg5[%c0_18, %c0_19], %36 {strides = array<i32>} : memref<4x512xf32, #tpu.memory_space<vmem>>, vector<4x512xf32>,
    } else {
    }
    %c0 = arith.constant 0 : index
    %c0_1 = arith.constant 0 : index
    %3 = vector.load %arg2[%c0, %c0_1] : memref<4x512xf32, #tpu.memory_space<vmem>>, vector<4x512xf32>
    %c0_2 = arith.constant 0 : index
    %c0_3 = arith.constant 0 : index
    %4 = vector.load %arg3[%c0_2, %c0_3] : memref<4x512xf32, #tpu.memory_space<vmem>>, vector<4x512xf32>
    %cst = arith.constant 2.000000e+00 : f32
    %5 = vector.broadcast %cst : f32 to vector<4x512xf32>
    %6 = arith.mulf %5, %4 : vector<4x512xf32>
    %cst_4 = arith.constant 1.000000e+00 : f32
    %7 = vector.broadcast %cst_4 : f32 to vector<4x512xf32>
    %8 = arith.subf %7, %6 : vector<4x512xf32>
    %9 = arith.mulf %3, %8 : vector<4x512xf32>
    %10 = math.absf %3 : vector<4x512xf32>
    %cst_5 = arith.constant 0.000000e+00 : f32
    %11 = vector.broadcast %cst_5 : f32 to vector<4x512xf32>
    %12 = arith.subf %11, %10 : vector<4x512xf32>
    %13 = math.exp %12 : vector<4x512xf32>
    %cst_6 = arith.constant 1.000000e+00 : f32
    %14 = vector.broadcast %cst_6 : f32 to vector<4x512xf32>
    %15 = arith.addf %14, %13 : vector<4x512xf32>
    %16 = math.log %15 : vector<4x512xf32>
    %cst_7 = arith.constant 0.000000e+00 : f32
    %17 = vector.broadcast %cst_7 : f32 to vector<4x512xf32>
    %18 = arith.maximumf %9, %17 : vector<4x512xf32>
    %19 = arith.addf %18, %16 : vector<4x512xf32>
    %cst_8 = arith.constant 0.000000e+00 : f32
    %20 = vector.broadcast %cst_8 : f32 to vector<4x512xf32>
    %21 = arith.cmpf oge, %9, %20 : vector<4x512xf32>
    %cst_9 = arith.constant 1.000000e+00 : f32
    %22 = vector.broadcast %cst_9 : f32 to vector<4x512xf32>
    %23 = arith.select %21, %22, %13 : vector<4x512xi1>, vector<4x512xf32>
    %cst_10 = arith.constant 1.000000e+00 : f32
    %24 = vector.broadcast %cst_10 : f32 to vector<4x512xf32>
    %25 = arith.addf %24, %13 : vector<4x512xf32>
    %26 = tpu.reciprocal %25 {approx = true} : vector<4x512xf32> -> vector<4x512xf32>
    %27 = arith.mulf %23, %26 : vector<4x512xf32>
    %28 = arith.mulf %27, %27 : vector<4x512xf32>
    %29 = arith.mulf %28, %19 : vector<4x512xf32>
    %c0_11 = arith.constant 0 : index
    %c0_12 = arith.constant 0 : index
    %30 = vector.load %arg5[%c0_11, %c0_12] : memref<4x512xf32, #tpu.memory_space<vmem>>, vector<4x512xf32>
    %31 = arith.addf %30, %29 : vector<4x512xf32>
    %c0_13 = arith.constant 0 : index
    %c0_14 = arith.constant 0 : index
    %32 = vector.load %arg5[%c0_13, %c0_14] : memref<4x512xf32, #tpu.memory_space<vmem>>, vector<4x512xf32>
    tpu.vector_store %arg5[%c0_13, %c0_14], %31 {strides = array<i32>} : memref<4x512xf32, #tpu.memory_space<vmem>>, vector<4x512xf32>,
    %c0_i32_15 = arith.constant 0 : i32
    %33 = arith.cmpi eq, %arg1, %c0_i32_15 : i32
    %34 = arith.extui %33 : i1 to i32
    %c0_i32_16 = arith.constant 0 : i32
    %35 = arith.cmpi ne, %34, %c0_i32_16 : i32
    scf.if %35 {
      %c0_17 = arith.constant 0 : index
      %c0_18 = arith.constant 0 : index
      %36 = vector.load %arg5[%c0_17, %c0_18] : memref<4x512xf32, #tpu.memory_space<vmem>>, vector<4x512xf32>
      %37 = vector.shape_cast %36 : vector<4x512xf32> to vector<1x4x512xf32>
      %cst_19 = arith.constant dense<0.000000e+00> : vector<1xf32>
      %38 = vector.multi_reduction <add>, %37, %cst_19 [1, 2] : vector<1x4x512xf32> to vector<1xf32>
      %39 = vector.shape_cast %38 : vector<1xf32> to vector<1x1x1xf32>
      %40 = vector.extract %39[0, 0, 0] : f32 from vector<1x1x1xf32>
      %41 = tpu.iota {dimensions = array<i32: 0>} : vector<8x128xi32>
      %42 = tpu.iota {dimensions = array<i32: 1>} : vector<8x128xi32>
      %c0_i32_20 = arith.constant 0 : i32
      %43 = vector.broadcast %c0_i32_20 : i32 to vector<8x128xi32>
      %44 = arith.cmpi eq, %41, %43 : vector<8x128xi32>
      %c0_i32_21 = arith.constant 0 : i32
      %45 = vector.broadcast %c0_i32_21 : i32 to vector<8x128xi32>
      %46 = arith.cmpi eq, %42, %45 : vector<8x128xi32>
      %47 = arith.andi %44, %46 : vector<8x128xi1>
      %cst_22 = arith.constant 0.000000e+00 : f32
      %48 = vector.broadcast %40 : f32 to vector<8x128xf32>
      %49 = vector.broadcast %cst_22 : f32 to vector<8x128xf32>
      %50 = arith.select %47, %48, %49 : vector<8x128xi1>, vector<8x128xf32>
      %c0_23 = arith.constant 0 : index
      %c0_24 = arith.constant 0 : index
      %51 = vector.load %arg4[%c0_23, %c0_24] : memref<8x128xf32, #tpu.memory_space<vmem>>, vector<8x128xf32>
      tpu.vector_store %arg4[%c0_23, %c0_24], %50 {strides = array<i32>} : memref<8x128xf32, #tpu.memory_space<vmem>>, vector<8x128xf32>,
    } else {
    }
    return
  }
  func.func @transform_0(%arg0: i32, %arg1: i32) -> (i32, i32) {
    %c1_i32 = arith.constant 1 : i32
    %0 = arith.muli %arg0, %c1_i32 : i32
    %1 = arith.addi %0, %arg1 : i32
    %c0_i32 = arith.constant 0 : i32
    %2 = arith.minsi %1, %c0_i32 : i32
    %c0_i32_0 = arith.constant 0 : i32
    %c0_i32_1 = arith.constant 0 : i32
    return %2, %c0_i32_0 : i32, i32
  }
  func.func @transform_1(%arg0: i32, %arg1: i32) -> (i32, i32) {
    %c1_i32 = arith.constant 1 : i32
    %0 = arith.muli %arg0, %c1_i32 : i32
    %1 = arith.addi %0, %arg1 : i32
    %c0_i32 = arith.constant 0 : i32
    %2 = arith.minsi %1, %c0_i32 : i32
    %c0_i32_0 = arith.constant 0 : i32
    %c0_i32_1 = arith.constant 0 : i32
    return %2, %c0_i32_0 : i32, i32
  }
  func.func @transform_2(%arg0: i32, %arg1: i32) -> (i32, i32) {
    %c0_i32 = arith.constant 0 : i32
    %c0_i32_0 = arith.constant 0 : i32
    return %arg0, %c0_i32 : i32, i32
  }
}

</mosaic_0001>

<llo_original>
// kernel: tpu_custom_call.1
$region0: #{tpu_custom_call.1}
  #allocation0 [shape = 'u32[]', space=smem, size = 0x4, offset = 0x4, fixed_abs, tag = 'smem constant byte address 0x4 - core index']
  #allocation1 [shape = 'u32[144,128]{1,0:T(1,128)}', space=vmem, size = 0x12000, scoped, tag = 'internal scratch']
  #allocation2 [shape = 'f32[4,512]{1,0:T(4,128)}', space=vmem, size = 0x2000, scoped, tag = 'scratch operand']
  %s0 = inlined_call_operand.hbm [shape: f32[4,512], index: 0, kind: input, shape index: {}]
  %s1 = inlined_call_operand.hbm [shape: f32[4,512], index: 1, kind: input, shape index: {}]
  %s2 = inlined_call_operand.hbm [shape: f32[8,128], index: 2, kind: output, shape index: {}]
  %s3 = sld [smem:[#allocation0]]
  $region34: #{tpu_custom_call.1} parent=0
    _
  %s5 = ssub.s32 1, %s3
  %s6 = scalar_select 0, %s5, %s3
  $region1: #{tpu_custom_call.1} parent=0
    #allocation3 [shape = 'u8[8192]{0}', space=vmem, size = 0x2000, scoped, tag = 'input window, operand 0, single buffered']
    #allocation4 [shape = 's32[1]{0}', space=sflag, size = 0x4, scoped, tag = 'scoped memory for tpu_custom_call.1']
    #allocation5 [shape = 's32[1]{0}', space=sflag, size = 0x4, scoped, tag = 'scoped memory for tpu_custom_call.1']
    #allocation6 [shape = 'u8[8192]{0}', space=vmem, size = 0x2000, scoped, tag = 'input window, operand 1, single buffered']
    #allocation7 [shape = 's32[1]{0}', space=sflag, size = 0x4, scoped, tag = 'scoped memory for tpu_custom_call.1']
    #allocation8 [shape = 'u8[4096]{0}', space=vmem, size = 0x1000, scoped, tag = 'output window, operand 0, single buffered']
    %7 = vsyncpa [#allocation4], 0
    %8 = vsyncpa [#allocation7], 0
    %9 = vsyncpa [#allocation5], 0
    // Predicated region
    $region2: #{tpu_custom_call.1} parent=1 // pred_check
      _
    $region3: #{tpu_custom_call.1} parent=1 // pred_check_branch
      %11 = sbr.rel (0) target = $region5
    $region4: #{tpu_custom_call.1} parent=1 // pred_region
      %s12 = sadd.s32 0, 0
      %p13 = scmp.lt.s32.totalorder %s12, 0
      %s14 = scalar_select %p13, %s12, 0
      %s16 = ssub.s32 256, 256
      %17 = vsyncadd [#allocation4], %s16
      %s18 = smul.addr %s14, 4
      %s19 = smul.addr %s18, 64
      %s20 = scalar_lea.hbm %s0, %s19
      %s22 = sshll.u32 [#allocation3], 4
      %s23 = int_to_ptr.vmem [resolvable:$true] %s22
      %25 = dma.hbm_to_vmem [thread:$0]  %s20, 256, %s23, [#allocation4]
    $region5: #{tpu_custom_call.1} parent=1 // pred_fallthru
      _
    // Predicated region
    $region6: #{tpu_custom_call.1} parent=1 // pred_check
      _
    $region7: #{tpu_custom_call.1} parent=1 // pred_check_branch
      %27 = sbr.rel (0) target = $region9
    $region8: #{tpu_custom_call.1} parent=1 // pred_region
      %s28 = sadd.s32 0, 0
      %p29 = scmp.lt.s32.totalorder %s28, 0
      %s30 = scalar_select %p29, %s28, 0
      %s32 = ssub.s32 256, 256
      %33 = vsyncadd [#allocation7], %s32
      %s34 = smul.addr %s30, 4
      %s35 = smul.addr %s34, 64
      %s36 = scalar_lea.hbm %s1, %s35
      %s38 = sshll.u32 [#allocation6], 4
      %s39 = int_to_ptr.vmem [resolvable:$true] %s38
      %41 = dma.hbm_to_vmem [thread:$0]  %s36, 256, %s39, [#allocation7]
    $region9: #{tpu_custom_call.1} parent=1 // pred_fallthru
      _
    // Predicated region
    $region10: #{tpu_custom_call.1} parent=1 // pred_check
      _
    $region11: #{tpu_custom_call.1} parent=1 // pred_check_branch
      %43 = sbr.rel (0) target = $region13
    $region12: #{tpu_custom_call.1} parent=1 // pred_region
      %44 = dma.done [#allocation4], 256
    $region13: #{tpu_custom_call.1} parent=1 // pred_fallthru
      _
    // Predicated region
    $region14: #{tpu_custom_call.1} parent=1 // pred_check
      _
    $region15: #{tpu_custom_call.1} parent=1 // pred_check_branch
      %46 = sbr.rel (0) target = $region17
    $region16: #{tpu_custom_call.1} parent=1 // pred_region
      %47 = dma.done [#allocation7], 256
    $region17: #{tpu_custom_call.1} parent=1 // pred_fallthru
      _
    %s48 = sadd.s32 0, 0
    %p49 = scmp.lt.s32.totalorder %s48, 0
    %s50 = scalar_select %p49, %s48, 0
    %s51 = sadd.s32 0, 0
    %p52 = scmp.lt.s32.totalorder %s51, 0
    %s53 = scalar_select %p52, %s51, 0
    %p54 = scmp.eq.s32.totalorder 0, 0
    // Predicated region
    $region18: #{tpu_custom_call.1} parent=1 // pred_check
      %p55 = pneg %p54
    $region19: #{tpu_custom_call.1} parent=1 // pred_check_branch
      %57 = sbr.rel (%p55) target = $region21
    $region20: #{tpu_custom_call.1} parent=1 // pred_region
      %58 = vst [vmem:[#allocation2] sm:$0xff] 0.0
      %59 = vst [vmem:[#allocation2 + $0x8] sm:$0xff] 0.0
    $region21: #{tpu_custom_call.1} parent=1 // pred_fallthru
      _
    %v60 = vld [vmem:[#allocation3] sm:$0xff]
    %v61 = vld [vmem:[#allocation3 + $0x8] sm:$0xff]
    %v62 = vld [vmem:[#allocation6] sm:$0xff]
    %v63 = vld [vmem:[#allocation6 + $0x8] sm:$0xff]
    %v64 = vmul.f32 %v62, 2.0
    %v65 = vmul.f32 %v63, 2.0
    %v66 = vsub.f32 1.0, %v64
    %v67 = vsub.f32 1.0, %v65
    %v68 = vmul.f32 %v60, %v66
    %v69 = vmul.f32 %v61, %v67
    %v70 = vand.u32 2147483647, %v60
    %v71 = vand.u32 2147483647, %v61
    %v72 = vsub.f32 0.0, %v70
    %v73 = vsub.f32 0.0, %v71
    %v74 = vmul.f32 %v72, 1.442695
    %v75 = vpow.pop %v74
    %v76 = vmul.f32 %v73, 1.442695
    %v77 = vpow.pop %v76
    %v78 = vadd.f32 %v75, 1.0
    %v79 = vadd.f32 %v77, 1.0
    %v80 = vlog2.pop %v78
    %v81 = vmul.f32 %v80, 0.6931472
    %v82 = vlog2.pop %v79
    %v83 = vmul.f32 %v82, 0.6931472
    %v84 = vmax.f32 %v68, 0.0
    %v85 = vmax.f32 %v69, 0.0
    %v86 = vadd.f32 %v84, %v81
    %v87 = vadd.f32 %v85, %v83
    %vm88 = vcmp.ge.f32.partialorder %v68, 0.0
    %vm89 = vcmp.ge.f32.partialorder %v69, 0.0
    %v90 = vsel %vm88, 1.0, %v75
    %v91 = vsel %vm89, 1.0, %v77
    %v92 = vrcp.pop %v78
    %v93 = vrcp.pop %v79
    %v94 = vmul.f32 %v90, %v92
    %v95 = vmul.f32 %v91, %v93
    %v96 = vmul.f32 %v94, %v94
    %v97 = vmul.f32 %v95, %v95
    %v98 = vmul.f32 %v96, %v86
    %v99 = vmul.f32 %v97, %v87
    %v100 = vld [vmem:[#allocation2] sm:$0xff]
    %v101 = vld [vmem:[#allocation2 + $0x8] sm:$0xff]
    %v102 = vadd.f32 %v100, %v98
    %v103 = vadd.f32 %v101, %v99
    %104 = vst [vmem:[#allocation2] sm:$0xff] %v102
    %105 = vst [vmem:[#allocation2 + $0x8] sm:$0xff] %v103
    // Predicated region
    $region22: #{tpu_custom_call.1} parent=1 // pred_check
      %p106 = pneg %p54
    $region23: #{tpu_custom_call.1} parent=1 // pred_check_branch
      %108 = sbr.rel (%p106) target = $region25
    $region24: #{tpu_custom_call.1} parent=1 // pred_region
      %v109 = vld [vmem:[#allocation2] sm:$0xff]
      %v110 = vld [vmem:[#allocation2 + $0x8] sm:$0xff]
      %v113 = vcombine.high %v109, %v109
      %v114 = vcombine.high %v110, %v110
      %vm117 = vcmask 1043456
      %v118 = vsel %vm117, %v109, 0.0
      %v119 = vsel %vm117, %v113, 0.0
      %v120 = vadd.f32 %v118, %v119
      %v121 = vsel %vm117, %v110, 0.0
      %v122 = vadd.f32 %v120, %v121
      %v123 = vsel %vm117, %v114, 0.0
      %v124 = vadd.f32 %v122, %v123
      %125 = vadd.xlane.f32.xlu0 %v124
      %v126 = vpop.xlane.xlu0 %125
      %v127 = vrot.slane %v126, 4
      %v128 = vadd.f32 %v126, %v127
      %v129 = vrot.slane %v128, 2
      %v130 = vadd.f32 %v128, %v129
      %v131 = vrot.slane %v130, 1
      %v132 = vadd.f32 %v130, %v131
      %s133 = vtos %v132
      %v134 = vlaneseq
      %v135 = vshrl.u32 %v134, 7
      %v136 = vlaneseq
      %v137 = vand.u32 %v136, 127
      %vm138 = vcmp.eq.s32.totalorder %v135, 0
      %vm139 = vcmp.eq.s32.totalorder %v137, 0
      %vm140 = vmand %vm138, %vm139
      %v141 = vstv %s133
      %v142 = vsel %vm140, %v141, 0.0
      %143 = vst [vmem:[#allocation8] sm:$0xff] %v142
    $region25: #{tpu_custom_call.1} parent=1 // pred_fallthru
      _
    // Predicated region
    $region26: #{tpu_custom_call.1} parent=1 // pred_check
      _
    $region27: #{tpu_custom_call.1} parent=1 // pred_check_branch
      %145 = sbr.rel (0) target = $region29
    $region28: #{tpu_custom_call.1} parent=1 // pred_region
      %s147 = ssub.s32 128, 128
      %148 = vsyncadd [#allocation5], %s147
      %s150 = sshll.u32 [#allocation8], 4
      %s151 = int_to_ptr.vmem [resolvable:$true] %s150
      %153 = dma.vmem_to_hbm [thread:$0]  %s151, 128, %s2, [#allocation5]
    $region29: #{tpu_custom_call.1} parent=1 // pred_fallthru
      _
    // Predicated region
    $region30: #{tpu_custom_call.1} parent=1 // pred_check
      _
    $region31: #{tpu_custom_call.1} parent=1 // pred_check_branch
      %155 = sbr.rel (0) target = $region33
    $region32: #{tpu_custom_call.1} parent=1 // pred_region
      %156 = dma.done [#allocation5], 128
    $region33: #{tpu_custom_call.1} parent=1 // pred_fallthru
      _
    %157 = vsyncpa [#allocation4], 1
    %158 = vsyncpa [#allocation7], 1
    %159 = vsyncpa [#allocation5], 1

</llo_original>
